<compile_context>
chip_gen: v7x
topology: tpu7x:2x2x1
jax: 0.10.0
libtpu: 0.0.40
codegen_flags: <defaults>
</compile_context>

<pallas_src>
import functools

import jax
import jax.numpy as jnp
from jax.experimental import pallas as pl
from jax.experimental.pallas import tpu as pltpu


def _leaky_relu(x, slope):
    return jnp.where(x >= 0, x, slope * x)


def _round_up(x, m):
    return ((x + m - 1) // m) * m


def _block_diag(w, k):
    """(din, dout) -> (k*din, k*dout) block-diagonal with `w` repeated on the diagonal."""
    din, dout = w.shape
    blocks = jnp.zeros((k, din, k, dout), w.dtype)
    idx = jnp.arange(k)
    blocks = blocks.at[idx, :, idx, :].set(w)
    return blocks.reshape(k * din, k * dout)


# --------------------------------------------------------------------------
# Fused forward kernel.  One grid axis over batch tiles.  All weights are
# full-block VMEM residents (bf16).  Intermediates never touch HBM.
#
# Per batch tile of TM rows:
#   masks     = sigmoid(x @ Wm_flat + bm_flat)                 (TM, K*D)
#   x_all     = concat(x * masks_per_view, x)                  (TM, (K+1)*D)
#   z_all     = enc_bd(x_all)   (block-diag, K+1 blocks)       (TM, (K+1)*Z)
#   z, z_x    = split(z_all)                                   (TM, K*Z), (TM, Z)
#   x_pred    = dec_bd(z)       (block-diag, K blocks)         (TM, K*D)
#   z_x_pred  = cls(z_x)                                       (TM, Z)
#   out slab  = [x_pred | z | masks | z_x | z_x_pred | 0-pad]  (TM, 256)
# --------------------------------------------------------------------------
def _make_fused_kernel(n_enc, n_dec, k_num, d, z_dim, slab_width, slope):
    def kernel(x_ref, wm_ref, bm_ref, *refs):
        enc_bd = refs[:n_enc]
        dec_bd = refs[n_enc:n_enc + n_dec]
        cls_w1, cls_b1, cls_w2, cls_b2 = refs[n_enc + n_dec:n_enc + n_dec + 4]
        out_ref = refs[n_enc + n_dec + 4]

        x = x_ref[...].astype(jnp.float32)                               # (TM, D)
        x_bf = x.astype(jnp.bfloat16)

        # ---- mask model: all K sub-nets as one lane-dense bf16 matmul ----
        logits = jnp.dot(x_bf, wm_ref[...], preferred_element_type=jnp.float32)
        masks = jax.nn.sigmoid(logits + bm_ref[...])                     # (TM, K*D) f32

        # ---- masked views + raw x, fed through ONE block-diagonal encoder ----
        x_rep = jnp.tile(x, (1, k_num))                                  # (TM, K*D)
        x_mask = x_rep * masks                                           # f32
        x_all = jnp.concatenate([x_mask, x], axis=1).astype(jnp.bfloat16)  # (TM, (K+1)*D)

        h = x_all
        for li in range(n_enc):
            h = jnp.dot(h, enc_bd[li][...], preferred_element_type=jnp.float32)
            if li < n_enc - 1:
                h = _leaky_relu(h, slope).astype(jnp.bfloat16)
        z_all = h                                                        # (TM, (K+1)*Z) f32
        z = z_all[:, :k_num * z_dim]                                     # (TM, K*Z)
        z_x = z_all[:, k_num * z_dim:]                                   # (TM, Z)

        # ---- decoder on z (block-diagonal over K views) ----
        h = z.astype(jnp.bfloat16)
        for li in range(n_dec):
            h = jnp.dot(h, dec_bd[li][...], preferred_element_type=jnp.float32)
            if li < n_dec - 1:
                h = _leaky_relu(h, slope).astype(jnp.bfloat16)
        x_pred = h                                                       # (TM, K*D) f32

        # ---- ssl classifier on z_x (written once; broadcast to K in wrapper) ----
        c = jnp.dot(z_x.astype(jnp.bfloat16), cls_w1[...],
                    preferred_element_type=jnp.float32)
        c = _leaky_relu(c + cls_b1[...], slope).astype(jnp.bfloat16)
        z_x_pred = jnp.dot(c, cls_w2[...], preferred_element_type=jnp.float32)
        z_x_pred = z_x_pred + cls_b2[...]                                # (TM, Z) f32

        # ---- pack everything into one lane-dense output slab ----
        used = 2 * k_num * d + k_num * z_dim + 2 * z_dim
        pieces = [x_pred, z, masks, z_x, z_x_pred]
        pad_w = slab_width - used
        if pad_w > 0:
            pieces.append(jnp.zeros((x.shape[0], pad_w), jnp.float32))
        out_ref[...] = jnp.concatenate(pieces, axis=1).astype(out_ref.dtype)

    return kernel


# --------------------------------------------------------------------------
# Parameter construction (deterministic, synthetic — no checkpoint loading).
# Weights are stored as (in_features, out_features) so the kernel computes
# x @ W, matching nn.Linear's  x @ W_torch.T  semantics.
# --------------------------------------------------------------------------
def init_cdtl_params(model_config, key):
    d = model_config["data_dim"]
    h = model_config["hidden_dim"]
    z = model_config["z_dim"]
    k_num = model_config["mask_num"]
    en = model_config["en_nlayers"]
    de = model_config["de_nlayers"]

    keys = iter(jax.random.split(key, 64))

    def w_init(shape):
        fan_in = shape[0]
        return (jax.random.normal(next(keys), shape, jnp.float32)
                * (1.0 / jnp.sqrt(jnp.float32(fan_in))))

    params = {}
    # mask_model (MCM-style MultiNets): mask_num x [Linear(d, d, bias) + sigmoid]
    params["mask_w"] = jnp.stack([w_init((d, d)) for _ in range(k_num)])      # (K,d,d)
    params["mask_b"] = jnp.stack(
        [0.01 * jax.random.normal(next(keys), (1, d), jnp.float32) for _ in range(k_num)]
    )                                                                          # (K,1,d)

    # encoder: (en-1) x [Linear(.., h, no bias) + LeakyReLU(0.2)] + Linear(.., z, no bias)
    enc_w, dim = [], d
    for _ in range(en - 1):
        enc_w.append(w_init((dim, h)))
        dim = h
    enc_w.append(w_init((dim, z)))
    params["enc_w"] = enc_w

    # decoder: (de-1) x [Linear(.., h, no bias) + LeakyReLU(0.2)] + Linear(.., d, no bias)
    dec_w, dim = [], z
    for _ in range(de - 1):
        dec_w.append(w_init((dim, h)))
        dim = h
    dec_w.append(w_init((dim, d)))
    params["dec_w"] = dec_w

    # ssl_model Classifier(z, h, z): Linear(z,h,bias) -> LeakyReLU(0.2) -> Linear(h,z,bias)
    params["cls_w1"] = w_init((z, h))
    params["cls_b1"] = 0.01 * jax.random.normal(next(keys), (h,), jnp.float32)
    params["cls_w2"] = w_init((h, z))
    params["cls_b2"] = 0.01 * jax.random.normal(next(keys), (z,), jnp.float32)
    return params


def prepare_cdtl_params(params, model_config):
    """One-time layout prep: fuse mask nets along lanes, build bf16 block-diag enc/dec.

    Encoder block-diag has K+1 blocks: the extra block carries the raw-x ("z_x") path so
    the standalone encoder matmuls disappear from the kernel.
    """
    d = model_config["data_dim"]
    k_num = model_config["mask_num"]
    bf = jnp.bfloat16
    prepped = {}
    # Wm (K, d, d) -> (d, K*d) so column k*d + j holds Wm[k][:, j].
    prepped["wm_flat"] = (jnp.transpose(params["mask_w"], (1, 0, 2))
                          .reshape(d, k_num * d).astype(bf))
    prepped["bm_flat"] = params["mask_b"].reshape(1, k_num * d)               # f32 bias
    prepped["enc_w_bd"] = [_block_diag(w, k_num + 1).astype(bf) for w in params["enc_w"]]
    prepped["dec_w_bd"] = [_block_diag(w, k_num).astype(bf) for w in params["dec_w"]]
    prepped["cls_w1"] = params["cls_w1"].astype(bf)
    prepped["cls_b1"] = params["cls_b1"].reshape(1, -1)                       # f32 bias
    prepped["cls_w2"] = params["cls_w2"].astype(bf)
    prepped["cls_b2"] = params["cls_b2"].reshape(1, -1)                       # f32 bias
    return prepped


def cdtl_forward(prepped, model_config, x_input):
    """Fused forward. Returns (x_pred, z, masks, z_x, z_x_pred) — PyTorch shapes."""
    b, d = x_input.shape
    k_num = model_config["mask_num"]
    z_dim = model_config["z_dim"]
    n_enc = model_config["en_nlayers"]
    n_dec = model_config["de_nlayers"]
    dtype = x_input.dtype

    # Packed output slab: [x_pred | z | masks | z_x | z_x_pred | pad] -> multiple of 128.
    used = 2 * k_num * d + k_num * z_dim + 2 * z_dim
    slab_w = _round_up(used, 128)

    # Row tile: multiple of 8, large enough to amortize per-grid-step overhead, small
    # enough that double-buffered blocks stay far under every chip's scoped VMEM.
    bp8 = _round_up(b, 8)
    tm = min(2048, bp8)
    # v7x: make sure the "parallel" batch axis has >= 2 grid steps so both TensorCores
    # get work (harmless on 1-TC v5e/v6e).
    if bp8 // tm < 2 and bp8 >= 16:
        tm = _round_up((bp8 + 1) // 2, 8)
    bp = _round_up(bp8, tm)

    x_pad = x_input if bp == b else jnp.pad(x_input, ((0, bp - b), (0, 0)))

    weights = [
        prepped["wm_flat"], prepped["bm_flat"],
        *prepped["enc_w_bd"], *prepped["dec_w_bd"],
        prepped["cls_w1"], prepped["cls_b1"], prepped["cls_w2"], prepped["cls_b2"],
    ]

    in_specs = [pl.BlockSpec((tm, d), lambda i: (i, 0))]
    for w in weights:
        in_specs.append(pl.BlockSpec(w.shape, lambda i: (0, 0)))  # full-block, VMEM resident

    out_spec = pl.BlockSpec((tm, slab_w), lambda i: (i, 0))
    kernel = _make_fused_kernel(n_enc, n_dec, k_num, d, z_dim, slab_w, slope=0.2)

    slab = pl.pallas_call(
        kernel,
        out_shape=jax.ShapeDtypeStruct((bp, slab_w), dtype),
        grid=(bp // tm,),
        in_specs=in_specs,
        out_specs=out_spec,
        compiler_params=pltpu.CompilerParams(dimension_semantics=("parallel",)),
    )(x_pad, *weights)

    # Unpack the slab: row-major reshapes / slices, broadcast z_x paths to K views.
    slab = slab[:b]
    kd, kz = k_num * d, k_num * z_dim
    x_pred = slab[:, :kd].reshape(b, k_num, d)
    z = slab[:, kd:kd + kz].reshape(b, k_num, z_dim)
    masks = slab[:, kd + kz:2 * kd + kz].reshape(b, k_num, d)
    off = 2 * kd + kz
    z_x = jnp.broadcast_to(slab[:, off:off + z_dim][:, None, :], (b, k_num, z_dim))
    z_x_pred = jnp.broadcast_to(
        slab[:, off + z_dim:off + 2 * z_dim][:, None, :], (b, k_num, z_dim))
    return x_pred, z, masks, z_x, z_x_pred


# --------------------------------------------------------------------------
# Pure-JAX reference (mirrors the PyTorch module exactly, incl. the K-times
# repeated z_x path) used to validate the fused/dedup'd kernel.
# --------------------------------------------------------------------------
def cdtl_forward_reference(params, model_config, x_input):
    slope = 0.2
    b, d = x_input.shape
    k_num = model_config["mask_num"]

    def leaky(v):
        return jnp.where(v >= 0, v, slope * v)

    def mlp(v, ws):
        for i, w in enumerate(ws):
            v = v @ w
            if i < len(ws) - 1:
                v = leaky(v)
        return v

    logits = jnp.einsum("bd,kde->bke", x_input, params["mask_w"]) + params["mask_b"][None, :, 0, :]
    masks = jax.nn.sigmoid(logits)                       # (B, K, D)
    x_mask = x_input[:, None, :] * masks                 # (B, K, D)
    x_multi = jnp.broadcast_to(x_input[:, None, :], (b, k_num, d))

    z_x = mlp(x_multi.reshape(b * k_num, d), params["enc_w"])
    z = mlp(x_mask.reshape(b * k_num, d), params["enc_w"])
    hcls = leaky(z_x @ params["cls_w1"] + params["cls_b1"])
    z_x_pred = hcls @ params["cls_w2"] + params["cls_b2"]
    x_pred = mlp(z, params["dec_w"])

    z_dim = z.shape[-1]
    return (
        x_pred.reshape(b, k_num, d),
        z.reshape(b, k_num, z_dim),
        masks,
        z_x.reshape(b, k_num, z_dim),
        z_x_pred.reshape(b, k_num, z_dim),
    )


if __name__ == "__main__":
    model_config = {
        "data_dim": 16,
        "hidden_dim": 32,
        "z_dim": 8,
        "mask_num": 4,
        "en_nlayers": 3,
        "de_nlayers": 3,
    }

    key = jax.random.PRNGKey(0)
    k_params, k_data = jax.random.split(key)

    params = init_cdtl_params(model_config, k_params)
    prepped = prepare_cdtl_params(params, model_config)
    x_input = jax.random.normal(k_data, (2, model_config["data_dim"]), jnp.float32)

    fwd = jax.jit(functools.partial(cdtl_forward, prepped, model_config))
    outs = fwd(x_input)
    jax.block_until_ready(outs)
    x_pred, z, masks, z_x, z_x_pred = outs

    # Shape sanity checks mirroring the PyTorch return signature.
    B, K, D, Z = 2, 4, 16, 8
    assert x_pred.shape == (B, K, D)
    assert z.shape == (B, K, Z)
    assert masks.shape == (B, K, D)
    assert z_x.shape == (B, K, Z)
    assert z_x_pred.shape == (B, K, Z)

    # Numerical check against the pure-JAX f32 reference.  The kernel uses bf16
    # MXU operands (f32 accumulation), so allow a bf16-scale absolute tolerance.
    ref = jax.jit(functools.partial(cdtl_forward_reference, params, model_config))(x_input)
    jax.block_until_ready(ref)
    for name, got, want in zip(("x_pred", "z", "masks", "z_x", "z_x_pred"), outs, ref):
        err = float(jnp.max(jnp.abs(got - want)))
        assert err < 1e-1, f"{name} mismatch: max abs err {err}"

    print("KERNEL_OK")
</pallas_src>

<mosaic_0001>
module attributes {stable_mosaic.version = 11 : i64} {
  func.func @kernel(%arg0: i32, %arg1: memref<8x16xf32, #tpu.memory_space<vmem>>, %arg2: memref<16x64xbf16, #tpu.memory_space<vmem>>, %arg3: memref<1x64xf32, #tpu.memory_space<vmem>>, %arg4: memref<80x160xbf16, #tpu.memory_space<vmem>>, %arg5: memref<160x160xbf16, #tpu.memory_space<vmem>>, %arg6: memref<160x40xbf16, #tpu.memory_space<vmem>>, %arg7: memref<32x128xbf16, #tpu.memory_space<vmem>>, %arg8: memref<128x128xbf16, #tpu.memory_space<vmem>>, %arg9: memref<128x64xbf16, #tpu.memory_space<vmem>>, %arg10: memref<8x32xbf16, #tpu.memory_space<vmem>>, %arg11: memref<1x32xf32, #tpu.memory_space<vmem>>, %arg12: memref<32x8xbf16, #tpu.memory_space<vmem>>, %arg13: memref<1x8xf32, #tpu.memory_space<vmem>>, %arg14: memref<8x256xf32, #tpu.memory_space<vmem>>) attributes {dimension_semantics = [#tpu.dimension_semantics<parallel>], iteration_bounds = array<i64: 1>, scalar_prefetch = 0 : i64, scratch_operands = 0 : i64, tpu.core_type = #tpu.core_type<tc>, window_params = [{transform_indices = @transform_0, window_bounds = array<i64: 8, 16>}, {pipeline_mode = #tpu.pipeline_mode<synchronous>, transform_indices = @transform_1, window_bounds = array<i64: 16, 64>}, {pipeline_mode = #tpu.pipeline_mode<synchronous>, transform_indices = @transform_2, window_bounds = array<i64: 1, 64>}, {pipeline_mode = #tpu.pipeline_mode<synchronous>, transform_indices = @transform_3, window_bounds = array<i64: 80, 160>}, {pipeline_mode = #tpu.pipeline_mode<synchronous>, transform_indices = @transform_4, window_bounds = array<i64: 160, 160>}, {pipeline_mode = #tpu.pipeline_mode<synchronous>, transform_indices = @transform_5, window_bounds = array<i64: 160, 40>}, {pipeline_mode = #tpu.pipeline_mode<synchronous>, transform_indices = @transform_6, window_bounds = array<i64: 32, 128>}, {pipeline_mode = #tpu.pipeline_mode<synchronous>, transform_indices = @transform_7, window_bounds = array<i64: 128, 128>}, {pipeline_mode = #tpu.pipeline_mode<synchronous>, transform_indices = @transform_8, window_bounds = array<i64: 128, 64>}, {pipeline_mode = #tpu.pipeline_mode<synchronous>, transform_indices = @transform_9, window_bounds = array<i64: 8, 32>}, {pipeline_mode = #tpu.pipeline_mode<synchronous>, transform_indices = @transform_10, window_bounds = array<i64: 1, 32>}, {pipeline_mode = #tpu.pipeline_mode<synchronous>, transform_indices = @transform_11, window_bounds = array<i64: 32, 8>}, {pipeline_mode = #tpu.pipeline_mode<synchronous>, transform_indices = @transform_12, window_bounds = array<i64: 1, 8>}, {transform_indices = @transform_13, window_bounds = array<i64: 8, 256>}]} {
    %c0 = arith.constant 0 : index
    %c0_0 = arith.constant 0 : index
    %0 = vector.load %arg1[%c0, %c0_0] : memref<8x16xf32, #tpu.memory_space<vmem>>, vector<8x16xf32>
    %1 = arith.truncf %0 : vector<8x16xf32> to vector<8x16xbf16>
    %c0_1 = arith.constant 0 : index
    %c0_2 = arith.constant 0 : index
    %2 = vector.load %arg2[%c0_1, %c0_2] : memref<16x64xbf16, #tpu.memory_space<vmem>>, vector<16x64xbf16>
    %cst = arith.constant dense<0.000000e+00> : vector<8x64xf32>
    %3 = tpu.matmul %1, %2, %cst {dimension_numbers = #tpu.dot_dimension_numbers<[1], [0], [0], [1], [0, 0, 1, 1], [], []>} : vector<8x16xbf16>, vector<16x64xbf16>, vector<8x64xf32> -> vector<8x64xf32>
    %c0_3 = arith.constant 0 : index
    %c0_4 = arith.constant 0 : index
    %4 = vector.load %arg3[%c0_3, %c0_4] : memref<1x64xf32, #tpu.memory_space<vmem>>, vector<1x64xf32>
    %5 = vector.broadcast %4 : vector<1x64xf32> to vector<8x64xf32>
    %6 = arith.addf %3, %5 : vector<8x64xf32>
    %7 = arith.negf %6 : vector<8x64xf32>
    %8 = math.exp %7 : vector<8x64xf32>
    %cst_5 = arith.constant 1.000000e+00 : f32
    %9 = vector.broadcast %cst_5 : f32 to vector<8x64xf32>
    %10 = arith.addf %9, %8 : vector<8x64xf32>
    %11 = arith.divf %9, %10 : vector<8x64xf32>
    %12 = tpu.concatenate %0, %0, %0, %0 in 1 : vector<8x16xf32>, vector<8x16xf32>, vector<8x16xf32>, vector<8x16xf32> -> vector<8x64xf32>
    %13 = arith.mulf %12, %11 : vector<8x64xf32>
    %14 = tpu.concatenate %13, %0 in 1 : vector<8x64xf32>, vector<8x16xf32> -> vector<8x80xf32>
    %15 = arith.truncf %14 : vector<8x80xf32> to vector<8x80xbf16>
    %c0_6 = arith.constant 0 : index
    %c0_7 = arith.constant 0 : index
    %16 = vector.load %arg4[%c0_6, %c0_7] : memref<80x160xbf16, #tpu.memory_space<vmem>>, vector<80x160xbf16>
    %cst_8 = arith.constant dense<0.000000e+00> : vector<8x160xf32>
    %17 = tpu.matmul %15, %16, %cst_8 {dimension_numbers = #tpu.dot_dimension_numbers<[1], [0], [0], [1], [0, 0, 1, 1], [], []>} : vector<8x80xbf16>, vector<80x160xbf16>, vector<8x160xf32> -> vector<8x160xf32>
    %cst_9 = arith.constant 0.000000e+00 : f32
    %18 = vector.broadcast %cst_9 : f32 to vector<8x160xf32>
    %19 = arith.cmpf oge, %17, %18 : vector<8x160xf32>
    %cst_10 = arith.constant 2.000000e-01 : f32
    %20 = vector.broadcast %cst_10 : f32 to vector<8x160xf32>
    %21 = arith.mulf %20, %17 : vector<8x160xf32>
    %22 = arith.select %19, %17, %21 : vector<8x160xi1>, vector<8x160xf32>
    %23 = arith.truncf %22 : vector<8x160xf32> to vector<8x160xbf16>
    %c0_11 = arith.constant 0 : index
    %c0_12 = arith.constant 0 : index
    %24 = vector.load %arg5[%c0_11, %c0_12] : memref<160x160xbf16, #tpu.memory_space<vmem>>, vector<160x160xbf16>
    %cst_13 = arith.constant dense<0.000000e+00> : vector<8x160xf32>
    %25 = tpu.matmul %23, %24, %cst_13 {dimension_numbers = #tpu.dot_dimension_numbers<[1], [0], [0], [1], [0, 0, 1, 1], [], []>} : vector<8x160xbf16>, vector<160x160xbf16>, vector<8x160xf32> -> vector<8x160xf32>
    %cst_14 = arith.constant 0.000000e+00 : f32
    %26 = vector.broadcast %cst_14 : f32 to vector<8x160xf32>
    %27 = arith.cmpf oge, %25, %26 : vector<8x160xf32>
    %cst_15 = arith.constant 2.000000e-01 : f32
    %28 = vector.broadcast %cst_15 : f32 to vector<8x160xf32>
    %29 = arith.mulf %28, %25 : vector<8x160xf32>
    %30 = arith.select %27, %25, %29 : vector<8x160xi1>, vector<8x160xf32>
    %31 = arith.truncf %30 : vector<8x160xf32> to vector<8x160xbf16>
    %c0_16 = arith.constant 0 : index
    %c0_17 = arith.constant 0 : index
    %32 = vector.load %arg6[%c0_16, %c0_17] : memref<160x40xbf16, #tpu.memory_space<vmem>>, vector<160x40xbf16>
    %cst_18 = arith.constant dense<0.000000e+00> : vector<8x40xf32>
    %33 = tpu.matmul %31, %32, %cst_18 {dimension_numbers = #tpu.dot_dimension_numbers<[1], [0], [0], [1], [0, 0, 1, 1], [], []>} : vector<8x160xbf16>, vector<160x40xbf16>, vector<8x40xf32> -> vector<8x40xf32>
    %34 = vector.extract_strided_slice %33 {offsets = [0, 0], sizes = [8, 32], strides = [1, 1]} : vector<8x40xf32> to vector<8x32xf32>
    %35 = vector.extract_strided_slice %33 {offsets = [0, 32], sizes = [8, 8], strides = [1, 1]} : vector<8x40xf32> to vector<8x8xf32>
    %36 = arith.truncf %34 : vector<8x32xf32> to vector<8x32xbf16>
    %c0_19 = arith.constant 0 : index
    %c0_20 = arith.constant 0 : index
    %37 = vector.load %arg7[%c0_19, %c0_20] : memref<32x128xbf16, #tpu.memory_space<vmem>>, vector<32x128xbf16>
    %cst_21 = arith.constant dense<0.000000e+00> : vector<8x128xf32>
    %38 = tpu.matmul %36, %37, %cst_21 {dimension_numbers = #tpu.dot_dimension_numbers<[1], [0], [0], [1], [0, 0, 1, 1], [], []>} : vector<8x32xbf16>, vector<32x128xbf16>, vector<8x128xf32> -> vector<8x128xf32>
    %cst_22 = arith.constant 0.000000e+00 : f32
    %39 = vector.broadcast %cst_22 : f32 to vector<8x128xf32>
    %40 = arith.cmpf oge, %38, %39 : vector<8x128xf32>
    %cst_23 = arith.constant 2.000000e-01 : f32
    %41 = vector.broadcast %cst_23 : f32 to vector<8x128xf32>
    %42 = arith.mulf %41, %38 : vector<8x128xf32>
    %43 = arith.select %40, %38, %42 : vector<8x128xi1>, vector<8x128xf32>
    %44 = arith.truncf %43 : vector<8x128xf32> to vector<8x128xbf16>
    %c0_24 = arith.constant 0 : index
    %c0_25 = arith.constant 0 : index
    %45 = vector.load %arg8[%c0_24, %c0_25] : memref<128x128xbf16, #tpu.memory_space<vmem>>, vector<128x128xbf16>
    %cst_26 = arith.constant dense<0.000000e+00> : vector<8x128xf32>
    %46 = tpu.matmul %44, %45, %cst_26 {dimension_numbers = #tpu.dot_dimension_numbers<[1], [0], [0], [1], [0, 0, 1, 1], [], []>} : vector<8x128xbf16>, vector<128x128xbf16>, vector<8x128xf32> -> vector<8x128xf32>
    %cst_27 = arith.constant 0.000000e+00 : f32
    %47 = vector.broadcast %cst_27 : f32 to vector<8x128xf32>
    %48 = arith.cmpf oge, %46, %47 : vector<8x128xf32>
    %cst_28 = arith.constant 2.000000e-01 : f32
    %49 = vector.broadcast %cst_28 : f32 to vector<8x128xf32>
    %50 = arith.mulf %49, %46 : vector<8x128xf32>
    %51 = arith.select %48, %46, %50 : vector<8x128xi1>, vector<8x128xf32>
    %52 = arith.truncf %51 : vector<8x128xf32> to vector<8x128xbf16>
    %c0_29 = arith.constant 0 : index
    %c0_30 = arith.constant 0 : index
    %53 = vector.load %arg9[%c0_29, %c0_30] : memref<128x64xbf16, #tpu.memory_space<vmem>>, vector<128x64xbf16>
    %cst_31 = arith.constant dense<0.000000e+00> : vector<8x64xf32>
    %54 = tpu.matmul %52, %53, %cst_31 {dimension_numbers = #tpu.dot_dimension_numbers<[1], [0], [0], [1], [0, 0, 1, 1], [], []>} : vector<8x128xbf16>, vector<128x64xbf16>, vector<8x64xf32> -> vector<8x64xf32>
    %55 = arith.truncf %35 : vector<8x8xf32> to vector<8x8xbf16>
    %c0_32 = arith.constant 0 : index
    %c0_33 = arith.constant 0 : index
    %56 = vector.load %arg10[%c0_32, %c0_33] : memref<8x32xbf16, #tpu.memory_space<vmem>>, vector<8x32xbf16>
    %cst_34 = arith.constant dense<0.000000e+00> : vector<8x32xf32>
    %57 = tpu.matmul %55, %56, %cst_34 {dimension_numbers = #tpu.dot_dimension_numbers<[1], [0], [0], [1], [0, 0, 1, 1], [], []>} : vector<8x8xbf16>, vector<8x32xbf16>, vector<8x32xf32> -> vector<8x32xf32>
    %c0_35 = arith.constant 0 : index
    %c0_36 = arith.constant 0 : index
    %58 = vector.load %arg11[%c0_35, %c0_36] : memref<1x32xf32, #tpu.memory_space<vmem>>, vector<1x32xf32>
    %59 = vector.broadcast %58 : vector<1x32xf32> to vector<8x32xf32>
    %60 = arith.addf %57, %59 : vector<8x32xf32>
    %cst_37 = arith.constant 0.000000e+00 : f32
    %61 = vector.broadcast %cst_37 : f32 to vector<8x32xf32>
    %62 = arith.cmpf oge, %60, %61 : vector<8x32xf32>
    %cst_38 = arith.constant 2.000000e-01 : f32
    %63 = vector.broadcast %cst_38 : f32 to vector<8x32xf32>
    %64 = arith.mulf %63, %60 : vector<8x32xf32>
    %65 = arith.select %62, %60, %64 : vector<8x32xi1>, vector<8x32xf32>
    %66 = arith.truncf %65 : vector<8x32xf32> to vector<8x32xbf16>
    %c0_39 = arith.constant 0 : index
    %c0_40 = arith.constant 0 : index
    %67 = vector.load %arg12[%c0_39, %c0_40] : memref<32x8xbf16, #tpu.memory_space<vmem>>, vector<32x8xbf16>
    %cst_41 = arith.constant dense<0.000000e+00> : vector<8x8xf32>
    %68 = tpu.matmul %66, %67, %cst_41 {dimension_numbers = #tpu.dot_dimension_numbers<[1], [0], [0], [1], [0, 0, 1, 1], [], []>} : vector<8x32xbf16>, vector<32x8xbf16>, vector<8x8xf32> -> vector<8x8xf32>
    %c0_42 = arith.constant 0 : index
    %c0_43 = arith.constant 0 : index
    %69 = vector.load %arg13[%c0_42, %c0_43] : memref<1x8xf32, #tpu.memory_space<vmem>>, vector<1x8xf32>
    %70 = vector.broadcast %69 : vector<1x8xf32> to vector<8x8xf32>
    %71 = arith.addf %68, %70 : vector<8x8xf32>
    %cst_44 = arith.constant 0.000000e+00 : f32
    %72 = vector.broadcast %cst_44 : f32 to vector<8x80xf32>
    %73 = tpu.concatenate %54, %34, %11, %35, %71, %72 in 1 : vector<8x64xf32>, vector<8x32xf32>, vector<8x64xf32>, vector<8x8xf32>, vector<8x8xf32>, vector<8x80xf32> -> vector<8x256xf32>
    %c0_45 = arith.constant 0 : index
    %c0_46 = arith.constant 0 : index
    %74 = vector.load %arg14[%c0_45, %c0_46] : memref<8x256xf32, #tpu.memory_space<vmem>>, vector<8x256xf32>
    tpu.vector_store %arg14[%c0_45, %c0_46], %73 {strides = array<i32>} : memref<8x256xf32, #tpu.memory_space<vmem>>, vector<8x256xf32>,
    return
  }
  func.func @transform_0(%arg0: i32) -> (i32, i32) {
    %c0_i32 = arith.constant 0 : i32
    %c0_i32_0 = arith.constant 0 : i32
    return %arg0, %c0_i32 : i32, i32
  }
  func.func @transform_1(%arg0: i32) -> (i32, i32) {
    %c0_i32 = arith.constant 0 : i32
    %c0_i32_0 = arith.constant 0 : i32
    %c0_i32_1 = arith.constant 0 : i32
    return %c0_i32, %c0_i32_0 : i32, i32
  }
  func.func @transform_2(%arg0: i32) -> (i32, i32) {
    %c0_i32 = arith.constant 0 : i32
    %c0_i32_0 = arith.constant 0 : i32
    %c0_i32_1 = arith.constant 0 : i32
    return %c0_i32, %c0_i32_0 : i32, i32
  }
  func.func @transform_3(%arg0: i32) -> (i32, i32) {
    %c0_i32 = arith.constant 0 : i32
    %c0_i32_0 = arith.constant 0 : i32
    %c0_i32_1 = arith.constant 0 : i32
    return %c0_i32, %c0_i32_0 : i32, i32
  }
  func.func @transform_4(%arg0: i32) -> (i32, i32) {
    %c0_i32 = arith.constant 0 : i32
    %c0_i32_0 = arith.constant 0 : i32
    %c0_i32_1 = arith.constant 0 : i32
    return %c0_i32, %c0_i32_0 : i32, i32
  }
  func.func @transform_5(%arg0: i32) -> (i32, i32) {
    %c0_i32 = arith.constant 0 : i32
    %c0_i32_0 = arith.constant 0 : i32
    %c0_i32_1 = arith.constant 0 : i32
    return %c0_i32, %c0_i32_0 : i32, i32
  }
  func.func @transform_6(%arg0: i32) -> (i32, i32) {
    %c0_i32 = arith.constant 0 : i32
    %c0_i32_0 = arith.constant 0 : i32
    %c0_i32_1 = arith.constant 0 : i32
    return %c0_i32, %c0_i32_0 : i32, i32
  }
  func.func @transform_7(%arg0: i32) -> (i32, i32) {
    %c0_i32 = arith.constant 0 : i32
    %c0_i32_0 = arith.constant 0 : i32
    %c0_i32_1 = arith.constant 0 : i32
    return %c0_i32, %c0_i32_0 : i32, i32
  }
  func.func @transform_8(%arg0: i32) -> (i32, i32) {
    %c0_i32 = arith.constant 0 : i32
    %c0_i32_0 = arith.constant 0 : i32
    %c0_i32_1 = arith.constant 0 : i32
    return %c0_i32, %c0_i32_0 : i32, i32
  }
  func.func @transform_9(%arg0: i32) -> (i32, i32) {
    %c0_i32 = arith.constant 0 : i32
    %c0_i32_0 = arith.constant 0 : i32
    %c0_i32_1 = arith.constant 0 : i32
    return %c0_i32, %c0_i32_0 : i32, i32
  }
  func.func @transform_10(%arg0: i32) -> (i32, i32) {
    %c0_i32 = arith.constant 0 : i32
    %c0_i32_0 = arith.constant 0 : i32
    %c0_i32_1 = arith.constant 0 : i32
    return %c0_i32, %c0_i32_0 : i32, i32
  }
  func.func @transform_11(%arg0: i32) -> (i32, i32) {
    %c0_i32 = arith.constant 0 : i32
    %c0_i32_0 = arith.constant 0 : i32
    %c0_i32_1 = arith.constant 0 : i32
    return %c0_i32, %c0_i32_0 : i32, i32
  }
  func.func @transform_12(%arg0: i32) -> (i32, i32) {
    %c0_i32 = arith.constant 0 : i32
    %c0_i32_0 = arith.constant 0 : i32
    %c0_i32_1 = arith.constant 0 : i32
    return %c0_i32, %c0_i32_0 : i32, i32
  }
  func.func @transform_13(%arg0: i32) -> (i32, i32) {
    %c0_i32 = arith.constant 0 : i32
    %c0_i32_0 = arith.constant 0 : i32
    return %arg0, %c0_i32 : i32, i32
  }
}

</mosaic_0001>

<llo_original>
// kernel: cdtl_forward.1
$region0: #{cdtl_forward.1}
  #allocation0 [shape = 'u32[]', space=smem, size = 0x4, offset = 0x4, fixed_abs, tag = 'smem constant byte address 0x4 - core index']
  #allocation1 [shape = 'u32[144,128]{1,0:T(1,128)}', space=vmem, size = 0x12000, scoped, tag = 'internal scratch']
  %s0 = inlined_call_operand.vmem [shape: f32[8,16], index: 0, kind: input, shape index: {}]
  %s1 = inlined_call_operand.vmem [shape: bf16[16,64], index: 1, kind: input, shape index: {}]
  %s2 = inlined_call_operand.vmem [shape: f32[1,64], index: 2, kind: input, shape index: {}]
  %s3 = inlined_call_operand.vmem [shape: bf16[80,160], index: 3, kind: input, shape index: {}]
  %s4 = inlined_call_operand.vmem [shape: bf16[160,160], index: 4, kind: input, shape index: {}]
  %s5 = inlined_call_operand.vmem [shape: bf16[160,40], index: 5, kind: input, shape index: {}]
  %s6 = inlined_call_operand.vmem [shape: bf16[32,128], index: 6, kind: input, shape index: {}]
  %s7 = inlined_call_operand.vmem [shape: bf16[128,128], index: 7, kind: input, shape index: {}]
  %s8 = inlined_call_operand.vmem [shape: bf16[128,64], index: 8, kind: input, shape index: {}]
  %s9 = inlined_call_operand.vmem [shape: bf16[8,32], index: 9, kind: input, shape index: {}]
  %s10 = inlined_call_operand.vmem [shape: f32[1,32], index: 10, kind: input, shape index: {}]
  %s11 = inlined_call_operand.vmem [shape: bf16[32,8], index: 11, kind: input, shape index: {}]
  %s12 = inlined_call_operand.vmem [shape: f32[1,8], index: 12, kind: input, shape index: {}]
  %s13 = inlined_call_operand.vmem [shape: f32[8,256], index: 13, kind: output, shape index: {}]
  %s14 = sld [smem:[#allocation0]]
  $region62: #{cdtl_forward.1} parent=0
    _
  %s16 = ssub.s32 1, %s14
  %s17 = scalar_select 0, %s16, %s14
  // Predicated region
  $region2: #{cdtl_forward.1} parent=0 // pred_check
    _
  $region3: #{cdtl_forward.1} parent=0 // pred_check_branch
    %19 = sbr.rel (0) target = $region5
  $region4: #{cdtl_forward.1} parent=0 // pred_region
    _
  $region5: #{cdtl_forward.1} parent=0 // pred_fallthru
    _
  // Predicated region
  $region6: #{cdtl_forward.1} parent=0 // pred_check
    _
  $region7: #{cdtl_forward.1} parent=0 // pred_check_branch
    %21 = sbr.rel (0) target = $region9
  $region8: #{cdtl_forward.1} parent=0 // pred_region
    _
  $region9: #{cdtl_forward.1} parent=0 // pred_fallthru
    _
  // Predicated region
  $region10: #{cdtl_forward.1} parent=0 // pred_check
    _
  $region11: #{cdtl_forward.1} parent=0 // pred_check_branch
    %23 = sbr.rel (0) target = $region13
  $region12: #{cdtl_forward.1} parent=0 // pred_region
    _
  $region13: #{cdtl_forward.1} parent=0 // pred_fallthru
    _
  // Predicated region
  $region14: #{cdtl_forward.1} parent=0 // pred_check
    _
  $region15: #{cdtl_forward.1} parent=0 // pred_check_branch
    %25 = sbr.rel (0) target = $region17
  $region16: #{cdtl_forward.1} parent=0 // pred_region
    _
  $region17: #{cdtl_forward.1} parent=0 // pred_fallthru
    _
  // Predicated region
  $region18: #{cdtl_forward.1} parent=0 // pred_check
    _
  $region19: #{cdtl_forward.1} parent=0 // pred_check_branch
    %27 = sbr.rel (0) target = $region21
  $region20: #{cdtl_forward.1} parent=0 // pred_region
    _
  $region21: #{cdtl_forward.1} parent=0 // pred_fallthru
    _
  // Predicated region
  $region22: #{cdtl_forward.1} parent=0 // pred_check
    _
  $region23: #{cdtl_forward.1} parent=0 // pred_check_branch
    %29 = sbr.rel (0) target = $region25
  $region24: #{cdtl_forward.1} parent=0 // pred_region
    _
  $region25: #{cdtl_forward.1} parent=0 // pred_fallthru
    _
  // Predicated region
  $region26: #{cdtl_forward.1} parent=0 // pred_check
    _
  $region27: #{cdtl_forward.1} parent=0 // pred_check_branch
    %31 = sbr.rel (0) target = $region29
  $region28: #{cdtl_forward.1} parent=0 // pred_region
    _
  $region29: #{cdtl_forward.1} parent=0 // pred_fallthru
    _
  // Predicated region
  $region30: #{cdtl_forward.1} parent=0 // pred_check
    _
  $region31: #{cdtl_forward.1} parent=0 // pred_check_branch
    %33 = sbr.rel (0) target = $region33
  $region32: #{cdtl_forward.1} parent=0 // pred_region
    _
  $region33: #{cdtl_forward.1} parent=0 // pred_fallthru
    _
  // Predicated region
  $region34: #{cdtl_forward.1} parent=0 // pred_check
    _
  $region35: #{cdtl_forward.1} parent=0 // pred_check_branch
    %35 = sbr.rel (0) target = $region37
  $region36: #{cdtl_forward.1} parent=0 // pred_region
    _
  $region37: #{cdtl_forward.1} parent=0 // pred_fallthru
    _
  // Predicated region
  $region38: #{cdtl_forward.1} parent=0 // pred_check
    _
  $region39: #{cdtl_forward.1} parent=0 // pred_check_branch
    %37 = sbr.rel (0) target = $region41
  $region40: #{cdtl_forward.1} parent=0 // pred_region
    _
  $region41: #{cdtl_forward.1} parent=0 // pred_fallthru
    _
  // Predicated region
  $region42: #{cdtl_forward.1} parent=0 // pred_check
    _
  $region43: #{cdtl_forward.1} parent=0 // pred_check_branch
    %39 = sbr.rel (0) target = $region45
  $region44: #{cdtl_forward.1} parent=0 // pred_region
    _
  $region45: #{cdtl_forward.1} parent=0 // pred_fallthru
    _
  // Predicated region
  $region46: #{cdtl_forward.1} parent=0 // pred_check
    _
  $region47: #{cdtl_forward.1} parent=0 // pred_check_branch
    %41 = sbr.rel (0) target = $region49
  $region48: #{cdtl_forward.1} parent=0 // pred_region
    _
  $region49: #{cdtl_forward.1} parent=0 // pred_fallthru
    _
  // Predicated region
  $region50: #{cdtl_forward.1} parent=0 // pred_check
    _
  $region51: #{cdtl_forward.1} parent=0 // pred_check_branch
    %43 = sbr.rel (0) target = $region53
  $region52: #{cdtl_forward.1} parent=0 // pred_region
    _
  $region53: #{cdtl_forward.1} parent=0 // pred_fallthru
    _
  %v45 = vld [vmem:[%s0] sm:$0xff]
  %v46 = vpack.c.bf16 %v45, %v45
  %v47 = vld [vmem:[%s1] sm:$0xf]
  %v48 = vld [vmem:[%s1 + $0x4] sm:$0xf]
  %v49 = vld [vmem:[%s2] sm:$0x1]
  %v51 = vlaneseq
  %v52 = vshrl.u32 %v51, 7
  %v53 = vsub.s32 0, %v52
  %v54 = vrot.slane %v49, %v53
  %v58 = vunpack.c.l.b16 %v47
  %v59 = vunpack.c.l.b16 %v48
  %v60 = vpack.c.b16 %v59, %v58
  %vm62 = vcmask 130048
  %v64 = vsel %vm62, %v46, 0
  %66 = vmatprep.subr.bf16.mxu0 0
  %67 = vmatpush1.bf16.msra.mxu0 %v60
  %68 = vmatprep.subr.bf16.mxu0 0
  %69 = vmatpush1.bf16.msra.mxu0 0
  %70 = vmatprep.subr.bf16.mxu0 0
  %71 = vmatpush1.bf16.msra.mxu0 0
  %72 = vmatprep.subr.bf16.mxu0 0
  %73 = vmatpush1.bf16.msra.mxu0 0
  %74 = vmatprep.subr.bf16.mxu0 0
  %75 = vmatpush1.bf16.msra.mxu0 0
  %76 = vmatprep.subr.bf16.mxu0 0
  %77 = vmatpush1.bf16.msra.mxu0 0
  %78 = vmatprep.subr.bf16.mxu0 0
  %79 = vmatpush1.bf16.msra.mxu0 0
  %80 = vmatprep.subr.bf16.mxu0 0
  %81 = vmatpush1.bf16.msra.mxu0 0
  %82 = vmatprep.subr.bf16.mxu0 0
  %83 = vmatpush1.bf16.msra.mxu0 0
  %84 = vmatprep.subr.bf16.mxu0 0
  %85 = vmatpush1.bf16.msra.mxu0 0
  %86 = vmatprep.subr.bf16.mxu0 0
  %87 = vmatpush1.bf16.msra.mxu0 0
  %88 = vmatprep.subr.bf16.mxu0 0
  %89 = vmatpush1.bf16.msra.mxu0 0
  %90 = vmatprep.subr.bf16.mxu0 0
  %91 = vmatpush1.bf16.msra.mxu0 0
  %92 = vmatprep.subr.bf16.mxu0 0
  %93 = vmatpush1.bf16.msra.mxu0 0
  %94 = vmatprep.subr.bf16.mxu0 0
  %95 = vmatpush1.bf16.msra.mxu0 0
  %96 = vmatprep.subr.bf16.mxu0 0
  %97 = vmatpush1.bf16.msra.mxu0 0
  %98 = vmatprep.mubr.bf16.mxu0 0
  %99 = vmatmul.mubr.bf16.gmra.mrb[0].mxu0 %v64
  %v100 = vpop.f32.mrb[0].mxu0
  %v101 = vadd.f32 %v54, %v100
  %v102 = vpop.f32.mrb[0].mxu0
  %v103 = vpop.f32.mrb[0].mxu0
  %v104 = vpop.f32.mrb[0].mxu0
  %105 = vdwg.mxu0
  %v106 = vxor.u32 %v101, 2147483648
  %v107 = vmul.f32 %v106, 1.442695
  %v108 = vpow.pop %v107
  %v109 = vadd.f32 %v108, 1.0
  %v110 = vrcp.pop %v109
  %v111 = vmul.f32 1.0, %v110
  %113 = vrot.lane.b32.xlu0 %v45, 16
  %v114 = vpop.permute.xlu0 %113
  %116 = vrot.lane.b32.xlu0 %v45, 32
  %v117 = vpop.permute.xlu0 %116
  %119 = vrot.lane.b32.xlu0 %v45, 48
  %v120 = vpop.permute.xlu0 %119
  %v122 = vsel %vm62, %v45, %v114
  %vm123 = vcmask 261120
  %v124 = vsel %vm123, %v122, %v117
  %vm125 = vcmask 392192
  %v126 = vsel %vm125, %v124, %v120
  %v127 = vmul.f32 %v126, %v111
  %128 = vrot.lane.b32.xlu0 %v45, 64
  %v129 = vpop.permute.xlu0 %128
  %vm131 = vcmask 523264
  %v132 = vsel %vm131, %v127, %v129
  %v133 = vpack.c.bf16 %v132, %v132
  %v134 = vld [vmem:[%s3] sm:$0xff]
  %v135 = vld [vmem:[%s3 + $0x8] sm:$0xff]
  %v136 = vld [vmem:[%s3 + $0x10] sm:$0xff]
  %v137 = vld [vmem:[%s3 + $0x18] sm:$0xff]
  %v138 = vld [vmem:[%s3 + $0x20] sm:$0xff]
  %v139 = vld [vmem:[%s3 + $0x28] sm:$0xff]
  %v140 = vld [vmem:[%s3 + $0x30] sm:$0xff]
  %v141 = vld [vmem:[%s3 + $0x38] sm:$0xff]
  %v142 = vld [vmem:[%s3 + $0x40] sm:$0xff]
  %v143 = vld [vmem:[%s3 + $0x48] sm:$0xff]
  %v154 = vunpack.c.l.b16 %v134
  %v155 = vunpack.c.h.b16 %v134
  %v156 = vunpack.c.l.b16 %v135
  %v157 = vunpack.c.h.b16 %v135
  %v158 = vunpack.c.l.b16 %v136
  %v159 = vunpack.c.h.b16 %v136
  %v160 = vunpack.c.l.b16 %v137
  %v161 = vunpack.c.h.b16 %v137
  %v162 = vunpack.c.l.b16 %v138
  %v163 = vunpack.c.h.b16 %v138
  %v164 = vunpack.c.l.b16 %v139
  %v165 = vunpack.c.h.b16 %v139
  %v166 = vunpack.c.l.b16 %v140
  %v167 = vunpack.c.h.b16 %v140
  %v168 = vunpack.c.l.b16 %v141
  %v169 = vunpack.c.h.b16 %v141
  %v170 = vunpack.c.l.b16 %v142
  %v171 = vunpack.c.h.b16 %v142
  %v172 = vunpack.c.l.b16 %v143
  %v173 = vunpack.c.h.b16 %v143
  %v174 = vpack.c.b16 %v156, %v154
  %v175 = vpack.c.b16 %v157, %v155
  %v176 = vpack.c.b16 %v160, %v158
  %v177 = vpack.c.b16 %v161, %v159
  %v178 = vpack.c.b16 %v164, %v162
  %v179 = vpack.c.b16 %v165, %v163
  %v180 = vpack.c.b16 %v168, %v166
  %v181 = vpack.c.b16 %v169, %v167
  %v182 = vpack.c.b16 %v172, %v170
  %v183 = vpack.c.b16 %v173, %v171
  %vm194 = vcmask 654336
  %v196 = vsel %vm194, %v133, 0
  %198 = vmatprep.subr.bf16.mxu0 %v175
  %199 = vmatpush1.bf16.msra.mxu0 %v174
  %200 = vmatprep.subr.bf16.mxu0 %v177
  %201 = vmatpush1.bf16.msra.mxu0 %v176
  %202 = vmatprep.subr.bf16.mxu0 %v179
  %203 = vmatpush1.bf16.msra.mxu0 %v178
  %204 = vmatprep.subr.bf16.mxu0 %v181
  %205 = vmatpush1.bf16.msra.mxu0 %v180
  %206 = vmatprep.subr.bf16.mxu0 %v183
  %207 = vmatpush1.bf16.msra.mxu0 %v182
  %208 = vmatprep.subr.bf16.mxu0 0
  %209 = vmatpush1.bf16.msra.mxu0 0
  %210 = vmatprep.subr.bf16.mxu0 0
  %211 = vmatpush1.bf16.msra.mxu0 0
  %212 = vmatprep.subr.bf16.mxu0 0
  %213 = vmatpush1.bf16.msra.mxu0 0
  %214 = vmatprep.subr.bf16.mxu0 0
  %215 = vmatpush1.bf16.msra.mxu0 0
  %216 = vmatprep.subr.bf16.mxu0 0
  %217 = vmatpush1.bf16.msra.mxu0 0
  %218 = vmatprep.subr.bf16.mxu0 0
  %219 = vmatpush1.bf16.msra.mxu0 0
  %220 = vmatprep.subr.bf16.mxu0 0
  %221 = vmatpush1.bf16.msra.mxu0 0
  %222 = vmatprep.subr.bf16.mxu0 0
  %223 = vmatpush1.bf16.msra.mxu0 0
  %224 = vmatprep.subr.bf16.mxu0 0
  %225 = vmatpush1.bf16.msra.mxu0 0
  %226 = vmatprep.subr.bf16.mxu0 0
  %227 = vmatpush1.bf16.msra.mxu0 0
  %228 = vmatprep.subr.bf16.mxu0 0
  %229 = vmatpush1.bf16.msra.mxu0 0
  %230 = vmatprep.mubr.bf16.mxu0 0
  %231 = vmatmul.mubr.bf16.gmra.mrb[0].mxu0 %v196
  %v232 = vpop.f32.mrb[0].mxu0
  %v233 = vadd.f32 0.0, %v232
  %v234 = vpop.f32.mrb[0].mxu0
  %v235 = vadd.f32 0.0, %v234
  %v236 = vpop.f32.mrb[0].mxu0
  %v237 = vpop.f32.mrb[0].mxu0
  %238 = vdwg.mxu0
  %vm239 = vcmp.ge.f32.partialorder %v233, 0.0
  %vm240 = vcmp.ge.f32.partialorder %v235, 0.0
  %v241 = vmul.f32 %v233, 0.2
  %v242 = vmul.f32 %v235, 0.2
  %v243 = vsel %vm239, %v233, %v241
  %v244 = vsel %vm240, %v235, %v242
  %v245 = vpack.c.bf16 %v243, %v243
  %v246 = vpack.c.bf16 %v244, %v244
  %v247 = vld [vmem:[%s4] sm:$0xff]
  %v248 = vld [vmem:[%s4 + $0x8] sm:$0xff]
  %v249 = vld [vmem:[%s4 + $0x10] sm:$0xff]
  %v250 = vld [vmem:[%s4 + $0x18] sm:$0xff]
  %v251 = vld [vmem:[%s4 + $0x20] sm:$0xff]
  %v252 = vld [vmem:[%s4 + $0x28] sm:$0xff]
  %v253 = vld [vmem:[%s4 + $0x30] sm:$0xff]
  %v254 = vld [vmem:[%s4 + $0x38] sm:$0xff]
  %v255 = vld [vmem:[%s4 + $0x40] sm:$0xff]
  %v256 = vld [vmem:[%s4 + $0x48] sm:$0xff]
  %v257 = vld [vmem:[%s4 + $0x50] sm:$0xff]
  %v258 = vld [vmem:[%s4 + $0x58] sm:$0xff]
  %v259 = vld [vmem:[%s4 + $0x60] sm:$0xff]
  %v260 = vld [vmem:[%s4 + $0x68] sm:$0xff]
  %v261 = vld [vmem:[%s4 + $0x70] sm:$0xff]
  %v262 = vld [vmem:[%s4 + $0x78] sm:$0xff]
  %v263 = vld [vmem:[%s4 + $0x80] sm:$0xff]
  %v264 = vld [vmem:[%s4 + $0x88] sm:$0xff]
  %v265 = vld [vmem:[%s4 + $0x90] sm:$0xff]
  %v266 = vld [vmem:[%s4 + $0x98] sm:$0xff]
  %v287 = vunpack.c.l.b16 %v247
  %v288 = vunpack.c.h.b16 %v247
  %v289 = vunpack.c.l.b16 %v248
  %v290 = vunpack.c.h.b16 %v248
  %v291 = vunpack.c.l.b16 %v249
  %v292 = vunpack.c.h.b16 %v249
  %v293 = vunpack.c.l.b16 %v250
  %v294 = vunpack.c.h.b16 %v250
  %v295 = vunpack.c.l.b16 %v251
  %v296 = vunpack.c.h.b16 %v251
  %v297 = vunpack.c.l.b16 %v252
  %v298 = vunpack.c.h.b16 %v252
  %v299 = vunpack.c.l.b16 %v253
  %v300 = vunpack.c.h.b16 %v253
  %v301 = vunpack.c.l.b16 %v254
  %v302 = vunpack.c.h.b16 %v254
  %v303 = vunpack.c.l.b16 %v255
  %v304 = vunpack.c.h.b16 %v255
  %v305 = vunpack.c.l.b16 %v256
  %v306 = vunpack.c.h.b16 %v256
  %v307 = vunpack.c.l.b16 %v257
  %v308 = vunpack.c.h.b16 %v257
  %v309 = vunpack.c.l.b16 %v258
  %v310 = vunpack.c.h.b16 %v258
  %v311 = vunpack.c.l.b16 %v259
  %v312 = vunpack.c.h.b16 %v259
  %v313 = vunpack.c.l.b16 %v260
  %v314 = vunpack.c.h.b16 %v260
  %v315 = vunpack.c.l.b16 %v261
  %v316 = vunpack.c.h.b16 %v261
  %v317 = vunpack.c.l.b16 %v262
  %v318 = vunpack.c.h.b16 %v262
  %v319 = vunpack.c.l.b16 %v263
  %v320 = vunpack.c.h.b16 %v263
  %v321 = vunpack.c.l.b16 %v264
  %v322 = vunpack.c.h.b16 %v264
  %v323 = vunpack.c.l.b16 %v265
  %v324 = vunpack.c.h.b16 %v265
  %v325 = vunpack.c.l.b16 %v266
  %v326 = vunpack.c.h.b16 %v266
  %v327 = vpack.c.b16 %v289, %v287
  %v328 = vpack.c.b16 %v290, %v288
  %v329 = vpack.c.b16 %v293, %v291
  %v330 = vpack.c.b16 %v294, %v292
  %v331 = vpack.c.b16 %v297, %v295
  %v332 = vpack.c.b16 %v298, %v296
  %v333 = vpack.c.b16 %v301, %v299
  %v334 = vpack.c.b16 %v302, %v300
  %v335 = vpack.c.b16 %v305, %v303
  %v336 = vpack.c.b16 %v306, %v304
  %v337 = vpack.c.b16 %v309, %v307
  %v338 = vpack.c.b16 %v310, %v308
  %v339 = vpack.c.b16 %v313, %v311
  %v340 = vpack.c.b16 %v314, %v312
  %v341 = vpack.c.b16 %v317, %v315
  %v342 = vpack.c.b16 %v318, %v316
  %v343 = vpack.c.b16 %v321, %v319
  %v344 = vpack.c.b16 %v322, %v320
  %v345 = vpack.c.b16 %v325, %v323
  %v346 = vpack.c.b16 %v326, %v324
  %v368 = vsel %vm123, %v246, 0
  %370 = vmatprep.subr.bf16.mxu0 %v328
  %371 = vmatpush1.bf16.msra.mxu0 %v327
  %372 = vmatprep.subr.bf16.mxu0 %v330
  %373 = vmatpush1.bf16.msra.mxu0 %v329
  %374 = vmatprep.subr.bf16.mxu0 %v332
  %375 = vmatpush1.bf16.msra.mxu0 %v331
  %376 = vmatprep.subr.bf16.mxu0 %v334
  %377 = vmatpush1.bf16.msra.mxu0 %v333
  %378 = vmatprep.subr.bf16.mxu0 %v336
  %379 = vmatpush1.bf16.msra.mxu0 %v335
  %380 = vmatprep.subr.bf16.mxu0 %v338
  %381 = vmatpush1.bf16.msra.mxu0 %v337
  %382 = vmatprep.subr.bf16.mxu0 %v340
  %383 = vmatpush1.bf16.msra.mxu0 %v339
  %384 = vmatprep.subr.bf16.mxu0 %v342
  %385 = vmatpush1.bf16.msra.mxu0 %v341
  %386 = vmatprep.subr.bf16.mxu0 %v344
  %387 = vmatpush1.bf16.msra.mxu0 %v343
  %388 = vmatprep.subr.bf16.mxu0 %v346
  %389 = vmatpush1.bf16.msra.mxu0 %v345
  %390 = vmatprep.subr.bf16.mxu0 0
  %391 = vmatpush1.bf16.msra.mxu0 0
  %392 = vmatprep.subr.bf16.mxu0 0
  %393 = vmatpush1.bf16.msra.mxu0 0
  %394 = vmatprep.subr.bf16.mxu0 0
  %395 = vmatpush1.bf16.msra.mxu0 0
  %396 = vmatprep.subr.bf16.mxu0 0
  %397 = vmatpush1.bf16.msra.mxu0 0
  %398 = vmatprep.subr.bf16.mxu0 0
  %399 = vmatpush1.bf16.msra.mxu0 0
  %400 = vmatprep.subr.bf16.mxu0 0
  %401 = vmatpush1.bf16.msra.mxu0 0
  %402 = vmatprep.mubr.bf16.mxu0 %v368
  %403 = vmatmul.mubr.bf16.gmra.mrb[0].mxu0 %v245
  %v404 = vpop.f32.mrb[0].mxu0
  %v405 = vadd.f32 0.0, %v404
  %v406 = vpop.f32.mrb[0].mxu0
  %v407 = vadd.f32 0.0, %v406
  %v408 = vpop.f32.mrb[0].mxu0
  %v409 = vpop.f32.mrb[0].mxu0
  %410 = vdwg.mxu0
  %vm411 = vcmp.ge.f32.partialorder %v405, 0.0
  %vm412 = vcmp.ge.f32.partialorder %v407, 0.0
  %v413 = vmul.f32 %v405, 0.2
  %v414 = vmul.f32 %v407, 0.2
  %v415 = vsel %vm411, %v405, %v413
  %v416 = vsel %vm412, %v407, %v414
  %v417 = vpack.c.bf16 %v415, %v415
  %v418 = vpack.c.bf16 %v416, %v416
  %v419 = vld [vmem:[%s5] sm:$0xf]
  %v420 = vld [vmem:[%s5 + $0x4] sm:$0xf]
  %v421 = vld [vmem:[%s5 + $0x8] sm:$0xf]
  %v422 = vld [vmem:[%s5 + $0xc] sm:$0xf]
  %v423 = vld [vmem:[%s5 + $0x10] sm:$0xf]
  %v424 = vld [vmem:[%s5 + $0x14] sm:$0xf]
  %v425 = vld [vmem:[%s5 + $0x18] sm:$0xf]
  %v426 = vld [vmem:[%s5 + $0x1c] sm:$0xf]
  %v427 = vld [vmem:[%s5 + $0x20] sm:$0xf]
  %v428 = vld [vmem:[%s5 + $0x24] sm:$0xf]
  %v429 = vld [vmem:[%s5 + $0x28] sm:$0xf]
  %v430 = vld [vmem:[%s5 + $0x2c] sm:$0xf]
  %v431 = vld [vmem:[%s5 + $0x30] sm:$0xf]
  %v432 = vld [vmem:[%s5 + $0x34] sm:$0xf]
  %v433 = vld [vmem:[%s5 + $0x38] sm:$0xf]
  %v434 = vld [vmem:[%s5 + $0x3c] sm:$0xf]
  %v435 = vld [vmem:[%s5 + $0x40] sm:$0xf]
  %v436 = vld [vmem:[%s5 + $0x44] sm:$0xf]
  %v437 = vld [vmem:[%s5 + $0x48] sm:$0xf]
  %v438 = vld [vmem:[%s5 + $0x4c] sm:$0xf]
  %v459 = vunpack.c.l.b16 %v419
  %v460 = vunpack.c.l.b16 %v420
  %v461 = vunpack.c.l.b16 %v421
  %v462 = vunpack.c.l.b16 %v422
  %v463 = vunpack.c.l.b16 %v423
  %v464 = vunpack.c.l.b16 %v424
  %v465 = vunpack.c.l.b16 %v425
  %v466 = vunpack.c.l.b16 %v426
  %v467 = vunpack.c.l.b16 %v427
  %v468 = vunpack.c.l.b16 %v428
  %v469 = vunpack.c.l.b16 %v429
  %v470 = vunpack.c.l.b16 %v430
  %v471 = vunpack.c.l.b16 %v431
  %v472 = vunpack.c.l.b16 %v432
  %v473 = vunpack.c.l.b16 %v433
  %v474 = vunpack.c.l.b16 %v434
  %v475 = vunpack.c.l.b16 %v435
  %v476 = vunpack.c.l.b16 %v436
  %v477 = vunpack.c.l.b16 %v437
  %v478 = vunpack.c.l.b16 %v438
  %v479 = vpack.c.b16 %v460, %v459
  %v480 = vpack.c.b16 %v462, %v461
  %v481 = vpack.c.b16 %v464, %v463
  %v482 = vpack.c.b16 %v466, %v465
  %v483 = vpack.c.b16 %v468, %v467
  %v484 = vpack.c.b16 %v470, %v469
  %v485 = vpack.c.b16 %v472, %v471
  %v486 = vpack.c.b16 %v474, %v473
  %v487 = vpack.c.b16 %v476, %v475
  %v488 = vpack.c.b16 %v478, %v477
  %v500 = vsel %vm123, %v418, 0
  %502 = vmatprep.subr.bf16.mxu0 0
  %503 = vmatpush1.bf16.msra.mxu0 %v479
  %504 = vmatprep.subr.bf16.mxu0 0
  %505 = vmatpush1.bf16.msra.mxu0 %v480
  %506 = vmatprep.subr.bf16.mxu0 0
  %507 = vmatpush1.bf16.msra.mxu0 %v481
  %508 = vmatprep.subr.bf16.mxu0 0
  %509 = vmatpush1.bf16.msra.mxu0 %v482
  %510 = vmatprep.subr.bf16.mxu0 0
  %511 = vmatpush1.bf16.msra.mxu0 %v483
  %512 = vmatprep.subr.bf16.mxu0 0
  %513 = vmatpush1.bf16.msra.mxu0 %v484
  %514 = vmatprep.subr.bf16.mxu0 0
  %515 = vmatpush1.bf16.msra.mxu0 %v485
  %516 = vmatprep.subr.bf16.mxu0 0
  %517 = vmatpush1.bf16.msra.mxu0 %v486
  %518 = vmatprep.subr.bf16.mxu0 0
  %519 = vmatpush1.bf16.msra.mxu0 %v487
  %520 = vmatprep.subr.bf16.mxu0 0
  %521 = vmatpush1.bf16.msra.mxu0 %v488
  %522 = vmatprep.subr.bf16.mxu0 0
  %523 = vmatpush1.bf16.msra.mxu0 0
  %524 = vmatprep.subr.bf16.mxu0 0
  %525 = vmatpush1.bf16.msra.mxu0 0
  %526 = vmatprep.subr.bf16.mxu0 0
  %527 = vmatpush1.bf16.msra.mxu0 0
  %528 = vmatprep.subr.bf16.mxu0 0
  %529 = vmatpush1.bf16.msra.mxu0 0
  %530 = vmatprep.subr.bf16.mxu0 0
  %531 = vmatpush1.bf16.msra.mxu0 0
  %532 = vmatprep.subr.bf16.mxu0 0
  %533 = vmatpush1.bf16.msra.mxu0 0
  %534 = vmatprep.mubr.bf16.mxu0 %v500
  %535 = vmatmul.mubr.bf16.gmra.mrb[0].mxu0 %v417
  %v536 = vpop.f32.mrb[0].mxu0
  %v537 = vadd.f32 0.0, %v536
  %v538 = vpop.f32.mrb[0].mxu0
  %v539 = vpop.f32.mrb[0].mxu0
  %v540 = vpop.f32.mrb[0].mxu0
  %541 = vdwg.mxu0
  %v542 = vpack.c.bf16 %v537, %v537
  %v543 = vld [vmem:[%s6] sm:$0xf]
  %v544 = vld [vmem:[%s6 + $0x4] sm:$0xf]
  %v545 = vld [vmem:[%s6 + $0x8] sm:$0xf]
  %v546 = vld [vmem:[%s6 + $0xc] sm:$0xf]
  %v551 = vunpack.c.l.b16 %v543
  %v552 = vunpack.c.l.b16 %v544
  %v553 = vunpack.c.l.b16 %v545
  %v554 = vunpack.c.l.b16 %v546
  %v555 = vpack.c.b16 %v552, %v551
  %v556 = vpack.c.b16 %v554, %v553
  %v560 = vsel %vm123, %v542, 0
  %562 = vmatprep.subr.bf16.mxu0 0
  %563 = vmatpush1.bf16.msra.mxu0 %v555
  %564 = vmatprep.subr.bf16.mxu0 0
  %565 = vmatpush1.bf16.msra.mxu0 %v556
  %566 = vmatprep.subr.bf16.mxu0 0
  %567 = vmatpush1.bf16.msra.mxu0 0
  %568 = vmatprep.subr.bf16.mxu0 0
  %569 = vmatpush1.bf16.msra.mxu0 0
  %570 = vmatprep.subr.bf16.mxu0 0
  %571 = vmatpush1.bf16.msra.mxu0 0
  %572 = vmatprep.subr.bf16.mxu0 0
  %573 = vmatpush1.bf16.msra.mxu0 0
  %574 = vmatprep.subr.bf16.mxu0 0
  %575 = vmatpush1.bf16.msra.mxu0 0
  %576 = vmatprep.subr.bf16.mxu0 0
  %577 = vmatpush1.bf16.msra.mxu0 0
  %578 = vmatprep.subr.bf16.mxu0 0
  %579 = vmatpush1.bf16.msra.mxu0 0
  %580 = vmatprep.subr.bf16.mxu0 0
  %581 = vmatpush1.bf16.msra.mxu0 0
  %582 = vmatprep.subr.bf16.mxu0 0
  %583 = vmatpush1.bf16.msra.mxu0 0
  %584 = vmatprep.subr.bf16.mxu0 0
  %585 = vmatpush1.bf16.msra.mxu0 0
  %586 = vmatprep.subr.bf16.mxu0 0
  %587 = vmatpush1.bf16.msra.mxu0 0
  %588 = vmatprep.subr.bf16.mxu0 0
  %589 = vmatpush1.bf16.msra.mxu0 0
  %590 = vmatprep.subr.bf16.mxu0 0
  %591 = vmatpush1.bf16.msra.mxu0 0
  %592 = vmatprep.subr.bf16.mxu0 0
  %593 = vmatpush1.bf16.msra.mxu0 0
  %594 = vmatprep.mubr.bf16.mxu0 0
  %595 = vmatmul.mubr.bf16.gmra.mrb[0].mxu0 %v560
  %v596 = vpop.f32.mrb[0].mxu0
  %v597 = vadd.f32 0.0, %v596
  %v598 = vpop.f32.mrb[0].mxu0
  %v599 = vpop.f32.mrb[0].mxu0
  %v600 = vpop.f32.mrb[0].mxu0
  %601 = vdwg.mxu0
  %vm602 = vcmp.ge.f32.partialorder %v597, 0.0
  %v603 = vmul.f32 %v597, 0.2
  %v604 = vsel %vm602, %v597, %v603
  %v605 = vpack.c.bf16 %v604, %v604
  %v606 = vld [vmem:[%s7] sm:$0xf]
  %v607 = vld [vmem:[%s7 + $0x4] sm:$0xf]
  %v608 = vld [vmem:[%s7 + $0x8] sm:$0xf]
  %v609 = vld [vmem:[%s7 + $0xc] sm:$0xf]
  %v610 = vld [vmem:[%s7 + $0x10] sm:$0xf]
  %v611 = vld [vmem:[%s7 + $0x14] sm:$0xf]
  %v612 = vld [vmem:[%s7 + $0x18] sm:$0xf]
  %v613 = vld [vmem:[%s7 + $0x1c] sm:$0xf]
  %v614 = vld [vmem:[%s7 + $0x20] sm:$0xf]
  %v615 = vld [vmem:[%s7 + $0x24] sm:$0xf]
  %v616 = vld [vmem:[%s7 + $0x28] sm:$0xf]
  %v617 = vld [vmem:[%s7 + $0x2c] sm:$0xf]
  %v618 = vld [vmem:[%s7 + $0x30] sm:$0xf]
  %v619 = vld [vmem:[%s7 + $0x34] sm:$0xf]
  %v620 = vld [vmem:[%s7 + $0x38] sm:$0xf]
  %v621 = vld [vmem:[%s7 + $0x3c] sm:$0xf]
  %v638 = vunpack.c.l.b16 %v606
  %v639 = vunpack.c.l.b16 %v607
  %v640 = vunpack.c.l.b16 %v608
  %v641 = vunpack.c.l.b16 %v609
  %v642 = vunpack.c.l.b16 %v610
  %v643 = vunpack.c.l.b16 %v611
  %v644 = vunpack.c.l.b16 %v612
  %v645 = vunpack.c.l.b16 %v613
  %v646 = vunpack.c.l.b16 %v614
  %v647 = vunpack.c.l.b16 %v615
  %v648 = vunpack.c.l.b16 %v616
  %v649 = vunpack.c.l.b16 %v617
  %v650 = vunpack.c.l.b16 %v618
  %v651 = vunpack.c.l.b16 %v619
  %v652 = vunpack.c.l.b16 %v620
  %v653 = vunpack.c.l.b16 %v621
  %v654 = vpack.c.b16 %v639, %v638
  %v655 = vpack.c.b16 %v641, %v640
  %v656 = vpack.c.b16 %v643, %v642
  %v657 = vpack.c.b16 %v645, %v644
  %v658 = vpack.c.b16 %v647, %v646
  %v659 = vpack.c.b16 %v649, %v648
  %v660 = vpack.c.b16 %v651, %v650
  %v661 = vpack.c.b16 %v653, %v652
  %670 = vmatprep.subr.bf16.mxu0 0
  %671 = vmatpush1.bf16.msra.mxu0 %v654
  %672 = vmatprep.subr.bf16.mxu0 0
  %673 = vmatpush1.bf16.msra.mxu0 %v655
  %674 = vmatprep.subr.bf16.mxu0 0
  %675 = vmatpush1.bf16.msra.mxu0 %v656
  %676 = vmatprep.subr.bf16.mxu0 0
  %677 = vmatpush1.bf16.msra.mxu0 %v657
  %678 = vmatprep.subr.bf16.mxu0 0
  %679 = vmatpush1.bf16.msra.mxu0 %v658
  %680 = vmatprep.subr.bf16.mxu0 0
  %681 = vmatpush1.bf16.msra.mxu0 %v659
  %682 = vmatprep.subr.bf16.mxu0 0
  %683 = vmatpush1.bf16.msra.mxu0 %v660
  %684 = vmatprep.subr.bf16.mxu0 0
  %685 = vmatpush1.bf16.msra.mxu0 %v661
  %686 = vmatprep.subr.bf16.mxu0 0
  %687 = vmatpush1.bf16.msra.mxu0 0
  %688 = vmatprep.subr.bf16.mxu0 0
  %689 = vmatpush1.bf16.msra.mxu0 0
  %690 = vmatprep.subr.bf16.mxu0 0
  %691 = vmatpush1.bf16.msra.mxu0 0
  %692 = vmatprep.subr.bf16.mxu0 0
  %693 = vmatpush1.bf16.msra.mxu0 0
  %694 = vmatprep.subr.bf16.mxu0 0
  %695 = vmatpush1.bf16.msra.mxu0 0
  %696 = vmatprep.subr.bf16.mxu0 0
  %697 = vmatpush1.bf16.msra.mxu0 0
  %698 = vmatprep.subr.bf16.mxu0 0
  %699 = vmatpush1.bf16.msra.mxu0 0
  %700 = vmatprep.subr.bf16.mxu0 0
  %701 = vmatpush1.bf16.msra.mxu0 0
  %702 = vmatprep.mubr.bf16.mxu0 0
  %703 = vmatmul.mubr.bf16.gmra.mrb[0].mxu0 %v605
  %v704 = vpop.f32.mrb[0].mxu0
  %v705 = vadd.f32 0.0, %v704
  %v706 = vpop.f32.mrb[0].mxu0
  %v707 = vpop.f32.mrb[0].mxu0
  %v708 = vpop.f32.mrb[0].mxu0
  %709 = vdwg.mxu0
  %vm710 = vcmp.ge.f32.partialorder %v705, 0.0
  %v711 = vmul.f32 %v705, 0.2
  %v712 = vsel %vm710, %v705, %v711
  %v713 = vpack.c.bf16 %v712, %v712
  %v714 = vld [vmem:[%s8] sm:$0xf]
  %v715 = vld [vmem:[%s8 + $0x4] sm:$0xf]
  %v716 = vld [vmem:[%s8 + $0x8] sm:$0xf]
  %v717 = vld [vmem:[%s8 + $0xc] sm:$0xf]
  %v718 = vld [vmem:[%s8 + $0x10] sm:$0xf]
  %v719 = vld [vmem:[%s8 + $0x14] sm:$0xf]
  %v720 = vld [vmem:[%s8 + $0x18] sm:$0xf]
  %v721 = vld [vmem:[%s8 + $0x1c] sm:$0xf]
  %v722 = vld [vmem:[%s8 + $0x20] sm:$0xf]
  %v723 = vld [vmem:[%s8 + $0x24] sm:$0xf]
  %v724 = vld [vmem:[%s8 + $0x28] sm:$0xf]
  %v725 = vld [vmem:[%s8 + $0x2c] sm:$0xf]
  %v726 = vld [vmem:[%s8 + $0x30] sm:$0xf]
  %v727 = vld [vmem:[%s8 + $0x34] sm:$0xf]
  %v728 = vld [vmem:[%s8 + $0x38] sm:$0xf]
  %v729 = vld [vmem:[%s8 + $0x3c] sm:$0xf]
  %v746 = vunpack.c.l.b16 %v714
  %v747 = vunpack.c.l.b16 %v715
  %v748 = vunpack.c.l.b16 %v716
  %v749 = vunpack.c.l.b16 %v717
  %v750 = vunpack.c.l.b16 %v718
  %v751 = vunpack.c.l.b16 %v719
  %v752 = vunpack.c.l.b16 %v720
  %v753 = vunpack.c.l.b16 %v721
  %v754 = vunpack.c.l.b16 %v722
  %v755 = vunpack.c.l.b16 %v723
  %v756 = vunpack.c.l.b16 %v724
  %v757 = vunpack.c.l.b16 %v725
  %v758 = vunpack.c.l.b16 %v726
  %v759 = vunpack.c.l.b16 %v727
  %v760 = vunpack.c.l.b16 %v728
  %v761 = vunpack.c.l.b16 %v729
  %v762 = vpack.c.b16 %v747, %v746
  %v763 = vpack.c.b16 %v749, %v748
  %v764 = vpack.c.b16 %v751, %v750
  %v765 = vpack.c.b16 %v753, %v752
  %v766 = vpack.c.b16 %v755, %v754
  %v767 = vpack.c.b16 %v757, %v756
  %v768 = vpack.c.b16 %v759, %v758
  %v769 = vpack.c.b16 %v761, %v760
  %778 = vmatprep.subr.bf16.mxu0 0
  %779 = vmatpush1.bf16.msra.mxu0 %v762
  %780 = vmatprep.subr.bf16.mxu0 0
  %781 = vmatpush1.bf16.msra.mxu0 %v763
  %782 = vmatprep.subr.bf16.mxu0 0
  %783 = vmatpush1.bf16.msra.mxu0 %v764
  %784 = vmatprep.subr.bf16.mxu0 0
  %785 = vmatpush1.bf16.msra.mxu0 %v765
  %786 = vmatprep.subr.bf16.mxu0 0
  %787 = vmatpush1.bf16.msra.mxu0 %v766
  %788 = vmatprep.subr.bf16.mxu0 0
  %789 = vmatpush1.bf16.msra.mxu0 %v767
  %790 = vmatprep.subr.bf16.mxu0 0
  %791 = vmatpush1.bf16.msra.mxu0 %v768
  %792 = vmatprep.subr.bf16.mxu0 0
  %793 = vmatpush1.bf16.msra.mxu0 %v769
  %794 = vmatprep.subr.bf16.mxu0 0
  %795 = vmatpush1.bf16.msra.mxu0 0
  %796 = vmatprep.subr.bf16.mxu0 0
  %797 = vmatpush1.bf16.msra.mxu0 0
  %798 = vmatprep.subr.bf16.mxu0 0
  %799 = vmatpush1.bf16.msra.mxu0 0
  %800 = vmatprep.subr.bf16.mxu0 0
  %801 = vmatpush1.bf16.msra.mxu0 0
  %802 = vmatprep.subr.bf16.mxu0 0
  %803 = vmatpush1.bf16.msra.mxu0 0
  %804 = vmatprep.subr.bf16.mxu0 0
  %805 = vmatpush1.bf16.msra.mxu0 0
  %806 = vmatprep.subr.bf16.mxu0 0
  %807 = vmatpush1.bf16.msra.mxu0 0
  %808 = vmatprep.subr.bf16.mxu0 0
  %809 = vmatpush1.bf16.msra.mxu0 0
  %810 = vmatprep.mubr.bf16.mxu0 0
  %811 = vmatmul.mubr.bf16.gmra.mrb[0].mxu0 %v713
  %v812 = vpop.f32.mrb[0].mxu0
  %v813 = vadd.f32 0.0, %v812
  %v814 = vpop.f32.mrb[0].mxu0
  %v815 = vpop.f32.mrb[0].mxu0
  %v816 = vpop.f32.mrb[0].mxu0
  %817 = vdwg.mxu0
  %v818 = vld [vmem:[%s9] sm:$0xf]
  %v819 = vld [vmem:[%s10] sm:$0x1]
  %v821 = vlaneseq
  %v822 = vshrl.u32 %v821, 7
  %v823 = vsub.s32 0, %v822
  %v824 = vrot.slane %v819, %v823
  %827 = vrot.lane.b32.xlu0 %v542, 96
  %v828 = vpop.permute.xlu0 %827
  %vm829 = vcmask 64512
  %v831 = vsel %vm829, %v828, 0
  %vm833 = vcmask 1043456
  %v835 = vsel %vm833, %v818, 0
  %837 = vmatprep.subr.bf16.mxu0 0
  %838 = vmatpush1.bf16.msra.mxu0 %v835
  %839 = vmatprep.subr.bf16.mxu0 0
  %840 = vmatpush1.bf16.msra.mxu0 0
  %841 = vmatprep.subr.bf16.mxu0 0
  %842 = vmatpush1.bf16.msra.mxu0 0
  %843 = vmatprep.subr.bf16.mxu0 0
  %844 = vmatpush1.bf16.msra.mxu0 0
  %845 = vmatprep.subr.bf16.mxu0 0
  %846 = vmatpush1.bf16.msra.mxu0 0
  %847 = vmatprep.subr.bf16.mxu0 0
  %848 = vmatpush1.bf16.msra.mxu0 0
  %849 = vmatprep.subr.bf16.mxu0 0
  %850 = vmatpush1.bf16.msra.mxu0 0
  %851 = vmatprep.subr.bf16.mxu0 0
  %852 = vmatpush1.bf16.msra.mxu0 0
  %853 = vmatprep.subr.bf16.mxu0 0
  %854 = vmatpush1.bf16.msra.mxu0 0
  %855 = vmatprep.subr.bf16.mxu0 0
  %856 = vmatpush1.bf16.msra.mxu0 0
  %857 = vmatprep.subr.bf16.mxu0 0
  %858 = vmatpush1.bf16.msra.mxu0 0
  %859 = vmatprep.subr.bf16.mxu0 0
  %860 = vmatpush1.bf16.msra.mxu0 0
  %861 = vmatprep.subr.bf16.mxu0 0
  %862 = vmatpush1.bf16.msra.mxu0 0
  %863 = vmatprep.subr.bf16.mxu0 0
  %864 = vmatpush1.bf16.msra.mxu0 0
  %865 = vmatprep.subr.bf16.mxu0 0
  %866 = vmatpush1.bf16.msra.mxu0 0
  %867 = vmatprep.subr.bf16.mxu0 0
  %868 = vmatpush1.bf16.msra.mxu0 0
  %869 = vmatprep.mubr.bf16.mxu0 0
  %870 = vmatmul.mubr.bf16.gmra.mrb[0].mxu0 %v831
  %v871 = vpop.f32.mrb[0].mxu0
  %v872 = vadd.f32 %v824, %v871
  %v873 = vpop.f32.mrb[0].mxu0
  %v874 = vpop.f32.mrb[0].mxu0
  %v875 = vpop.f32.mrb[0].mxu0
  %876 = vdwg.mxu0
  %vm877 = vcmp.ge.f32.partialorder %v872, 0.0
  %v878 = vmul.f32 %v872, 0.2
  %v879 = vsel %vm877, %v872, %v878
  %v880 = vpack.c.bf16 %v879, %v879
  %v881 = vld [vmem:[%s11] sm:$0xf]
  %v882 = vld [vmem:[%s11 + $0x4] sm:$0xf]
  %v883 = vld [vmem:[%s11 + $0x8] sm:$0xf]
  %v884 = vld [vmem:[%s11 + $0xc] sm:$0xf]
  %v885 = vld [vmem:[%s12] sm:$0x1]
  %v887 = vlaneseq
  %v888 = vshrl.u32 %v887, 7
  %v889 = vsub.s32 0, %v888
  %v890 = vrot.slane %v885, %v889
  %v896 = vunpack.c.l.b16 %v881
  %v897 = vunpack.c.l.b16 %v882
  %v898 = vunpack.c.l.b16 %v883
  %v899 = vunpack.c.l.b16 %v884
  %v900 = vpack.c.b16 %v897, %v896
  %v901 = vpack.c.b16 %v899, %v898
  %v905 = vsel %vm123, %v880, 0
  %907 = vmatprep.subr.bf16.mxu0 0
  %908 = vmatpush1.bf16.msra.mxu0 %v900
  %909 = vmatprep.subr.bf16.mxu0 0
  %910 = vmatpush1.bf16.msra.mxu0 %v901
  %911 = vmatprep.subr.bf16.mxu0 0
  %912 = vmatpush1.bf16.msra.mxu0 0
  %913 = vmatprep.subr.bf16.mxu0 0
  %914 = vmatpush1.bf16.msra.mxu0 0
  %915 = vmatprep.subr.bf16.mxu0 0
  %916 = vmatpush1.bf16.msra.mxu0 0
  %917 = vmatprep.subr.bf16.mxu0 0
  %918 = vmatpush1.bf16.msra.mxu0 0
  %919 = vmatprep.subr.bf16.mxu0 0
  %920 = vmatpush1.bf16.msra.mxu0 0
  %921 = vmatprep.subr.bf16.mxu0 0
  %922 = vmatpush1.bf16.msra.mxu0 0
  %923 = vmatprep.subr.bf16.mxu0 0
  %924 = vmatpush1.bf16.msra.mxu0 0
  %925 = vmatprep.subr.bf16.mxu0 0
  %926 = vmatpush1.bf16.msra.mxu0 0
  %927 = vmatprep.subr.bf16.mxu0 0
  %928 = vmatpush1.bf16.msra.mxu0 0
  %929 = vmatprep.subr.bf16.mxu0 0
  %930 = vmatpush1.bf16.msra.mxu0 0
  %931 = vmatprep.subr.bf16.mxu0 0
  %932 = vmatpush1.bf16.msra.mxu0 0
  %933 = vmatprep.subr.bf16.mxu0 0
  %934 = vmatpush1.bf16.msra.mxu0 0
  %935 = vmatprep.subr.bf16.mxu0 0
  %936 = vmatpush1.bf16.msra.mxu0 0
  %937 = vmatprep.subr.bf16.mxu0 0
  %938 = vmatpush1.bf16.msra.mxu0 0
  %939 = vmatprep.mubr.bf16.mxu0 0
  %940 = vmatmul.mubr.bf16.gmra.mrb[0].mxu0 %v905
  %v941 = vpop.f32.mrb[0].mxu0
  %v942 = vadd.f32 %v890, %v941
  %v943 = vpop.f32.mrb[0].mxu0
  %v944 = vpop.f32.mrb[0].mxu0
  %v945 = vpop.f32.mrb[0].mxu0
  %946 = vdwg.mxu0
  %948 = vrot.lane.b32.xlu0 %v537, 64
  %v949 = vpop.permute.xlu0 %948
  %952 = vrot.lane.b32.xlu0 %v111, 96
  %v953 = vpop.permute.xlu0 %952
  %956 = vrot.lane.b32.xlu0 %v942, 40
  %v957 = vpop.permute.xlu0 %956
  %v959 = vsel %vm131, %v813, %v949
  %vm960 = vcmask 785408
  %v961 = vsel %vm960, %v959, %v953
  %v962 = vsel %vm123, %v953, %v537
  %vm963 = vcmask 326656
  %v964 = vsel %vm963, %v962, %v957
  %v965 = vsel %vm125, %v964, 0.0
  %966 = vst [vmem:[%s13] sm:$0xff] %v961
  %967 = vst [vmem:[%s13 + $0x8] sm:$0xff] %v965
  // Predicated region
  $region54: #{cdtl_forward.1} parent=0 // pred_check
    _
  $region55: #{cdtl_forward.1} parent=0 // pred_check_branch
    %969 = sbr.rel (0) target = $region57
  $region56: #{cdtl_forward.1} parent=0 // pred_region
    _
  $region57: #{cdtl_forward.1} parent=0 // pred_fallthru
    _
  // Predicated region
  $region58: #{cdtl_forward.1} parent=0 // pred_check
    _
  $region59: #{cdtl_forward.1} parent=0 // pred_check_branch
    %971 = sbr.rel (0) target = $region61
  $region60: #{cdtl_forward.1} parent=0 // pred_region
    _
  $region61: #{cdtl_forward.1} parent=0 // pred_fallthru
    _

</llo_original>
